<compile_context>
chip_gen: v7x
topology: tpu7x:2x2x1
jax: 0.10.0
libtpu: 0.0.40
codegen_flags: <defaults>
</compile_context>

<pallas_src>
import functools

import jax
import jax.numpy as jnp
from jax.experimental import pallas as pl
from jax.experimental.pallas import tpu as pltpu


def _round_up(x, m):
    return (x + m - 1) // m * m


@functools.lru_cache(maxsize=None)
def _buffered_pipeline_supported():
    """Probe once whether pipeline_mode=pl.Buffered(1) lowers/runs on this backend."""
    try:
        def _probe(x_ref, o_ref):
            o_ref[...] = x_ref[...]

        fn = pl.pallas_call(
            _probe,
            out_shape=jax.ShapeDtypeStruct((8, 128), jnp.float32),
            grid=(1,),
            in_specs=[pl.BlockSpec((8, 128), lambda i: (0, 0),
                                   pipeline_mode=pl.Buffered(1))],
            out_specs=pl.BlockSpec((8, 128), lambda i: (0, 0)),
        )
        jax.block_until_ready(fn(jnp.zeros((8, 128), jnp.float32)))
        return True
    except Exception:
        return False


def _vmem_budget_bytes():
    """~75% of this generation's VMEM (headroom for compiler scratch / pipeline bufs)."""
    try:
        cap = int(pltpu.get_tpu_info().vmem_capacity_bytes)
    except Exception:
        cap = 64 * 1024 * 1024  # v7x per-TC floor
    return min(cap * 3 // 4, 100 * 1024 * 1024)


def _choose_tiling(M, tm_cap, align=8):
    """Pick (tm, M_padded): tm <= tm_cap, aligned, and >= 2 grid steps when possible
    so v7x's two TensorCores can both be fed via the 'parallel' grid axis."""
    M_pad = _round_up(max(M, align), align)
    if M_pad <= align:
        return M_pad, M_pad
    n_steps = max(2, -(-M_pad // tm_cap))
    tm = min(_round_up(-(-M_pad // n_steps), align), tm_cap)
    return tm, _round_up(M_pad, tm)


# ---------------------------------------------------------------------------
# Fused kernel: out = relu(...relu(relu(x @ W0 + b0) @ W1 + b1)... @ WL + bL)
# ---------------------------------------------------------------------------
def _fused_mlp_kernel(x_ref, *refs, num_layers, compute_dtype):
    # refs layout: (w0, b0, w1, b1, ..., w_{L-1}, b_{L-1}, o_ref)
    o_ref = refs[-1]
    h = x_ref[...].astype(compute_dtype)          # f32 -> bf16 cast in-kernel (VPU)
    for layer in range(num_layers):
        w_ref = refs[2 * layer]
        b_ref = refs[2 * layer + 1]
        acc = jnp.dot(h, w_ref[...], preferred_element_type=jnp.float32)   # MXU
        acc = jnp.maximum(acc + b_ref[...], 0.0)  # bias + ReLU on f32 accumulator
        if layer + 1 < num_layers:
            h = acc.astype(compute_dtype)
        else:
            o_ref[...] = acc.astype(o_ref.dtype)


def fused_mlp(x2d, weights, biases, *, out_dtype=jnp.bfloat16,
              compute_dtype=jnp.bfloat16, tm_cap=512):
    """x2d: [M, K0] (f32 or bf16); weights[l]: [K_l, N_l] bf16; biases[l]: [1, N_l] f32."""
    M, K0 = x2d.shape
    num_layers = len(weights)
    n_out = int(weights[-1].shape[1])
    assert len(biases) == num_layers and int(weights[0].shape[0]) == K0

    budget = _vmem_budget_bytes()
    single_buffered = _buffered_pipeline_supported()
    w_buf = 1 if single_buffered else 2
    w_bytes = sum(int(w.size) * w.dtype.itemsize for w in weights) * w_buf
    b_bytes = sum(int(b.size) * b.dtype.itemsize for b in biases) * w_buf

    # Residency guard (matters on v7x's 64 MiB): if the resident weights would not
    # fit, split the layer stack across two chained fused calls (ReLU is applied on
    # every layer, so chaining preserves semantics).
    if num_layers > 1 and (w_bytes + b_bytes) > budget * 3 // 4:
        mid = num_layers // 2
        h = fused_mlp(x2d, weights[:mid], biases[:mid], out_dtype=compute_dtype,
                      compute_dtype=compute_dtype, tm_cap=tm_cap)
        return fused_mlp(h, weights[mid:], biases[mid:], out_dtype=out_dtype,
                         compute_dtype=compute_dtype, tm_cap=tm_cap)

    tm, M_padded = _choose_tiling(M, tm_cap)
    if M_padded != M:
        x2d = jnp.pad(x2d, ((0, M_padded - M), (0, 0)))

    def const_spec(shape):
        # index_map is constant across the grid -> never re-fetched; single buffer
        # halves the resident footprint when the backend supports it.
        if single_buffered:
            return pl.BlockSpec(shape, lambda i: (0, 0), pipeline_mode=pl.Buffered(1))
        return pl.BlockSpec(shape, lambda i: (0, 0))

    in_specs = [pl.BlockSpec((tm, K0), lambda i: (i, 0))]
    args = [x2d]                                   # f32 x, cast inside the kernel
    for w, b in zip(weights, biases):
        in_specs.append(const_spec(tuple(int(d) for d in w.shape)))
        in_specs.append(const_spec(tuple(int(d) for d in b.shape)))
        args.extend([w, b])

    # VMEM estimate: resident weights/biases + double-buffered x/out tiles + f32 temps.
    act_bytes = 2 * tm * (K0 * x2d.dtype.itemsize + n_out * jnp.dtype(out_dtype).itemsize)
    tmp_bytes = 3 * tm * max(int(w.shape[1]) for w in weights) * 4
    need = w_bytes + b_bytes + act_bytes + tmp_bytes
    vmem_limit = int(min(budget, max(2 * need, 32 * 1024 * 1024)))

    kernel = functools.partial(_fused_mlp_kernel, num_layers=num_layers,
                               compute_dtype=compute_dtype)

    y = pl.pallas_call(
        kernel,
        out_shape=jax.ShapeDtypeStruct((M_padded, n_out), out_dtype),
        grid_spec=pltpu.PrefetchScalarGridSpec(
            num_scalar_prefetch=0,
            grid=(M_padded // tm,),
            in_specs=in_specs,
            out_specs=pl.BlockSpec((tm, n_out), lambda i: (i, 0)),
        ),
        compiler_params=pltpu.CompilerParams(
            dimension_semantics=("parallel",),
            vmem_limit_bytes=vmem_limit,
        ),
    )(*args)
    return y[:M] if M_padded != M else y


# ---------------------------------------------------------------------------
# Frontend glue: windowed unfold over time (stride => subsampling) + mask pool
# ---------------------------------------------------------------------------
def _frontend_unfold(x, seq_mask, *, window, stride):
    B, T, F = x.shape
    T_out = (T - window) // stride + 1
    if stride == window:
        # Non-overlapping windows: the unfold is a free reshape (no copy).
        x2d = x[:, : T_out * window, :].reshape(B * T_out, window * F)
        mask_out = seq_mask[:, : T_out * window].reshape(B, T_out, window).any(axis=-1)
    else:
        # Overlapping windows: per-tap strided slices concatenated along features
        # (no XLA gather).  Column order is (tap, feature)-major to match the conv
        # weight flatten below.
        # TODO(synk): fold the tap duplication into the kernel's x BlockSpec / DMA
        # so x is read from HBM exactly once.
        stop = (T_out - 1) * stride + 1
        taps = [x[:, tap: tap + stop: stride, :] for tap in range(window)]
        x2d = jnp.concatenate(taps, axis=-1).reshape(B * T_out, window * F)
        mask_taps = [seq_mask[:, tap: tap + stop: stride] for tap in range(window)]
        mask_out = jnp.stack(mask_taps, axis=-1).any(axis=-1)
    return x2d, mask_out, T_out


def prepare_params(params, compute_dtype=jnp.bfloat16):
    """One-time prep (outside jit): flatten torch Conv1d weight (C_out, F_in, W) to
    (W*F_in, C_out) matching the (tap, feature) unfold order, cast weights to bf16,
    biases to (1, N) f32.  Avoids per-forward transpose/convert XLA passes."""
    conv_w = params["conv_w"]
    C_out, F_in, W = conv_w.shape
    w_front = jnp.transpose(conv_w, (2, 1, 0)).reshape(W * F_in, C_out)
    weights = [w_front] + [w for (w, _) in params["layers"]]
    biases = [params["conv_b"]] + [b for (_, b) in params["layers"]]
    weights = tuple(jnp.asarray(w, compute_dtype) for w in weights)
    biases = tuple(jnp.asarray(b, jnp.float32).reshape(1, -1) for b in biases)
    return {"weights": weights, "biases": biases}


# ---------------------------------------------------------------------------
# FeedForwardEncoderV1.forward  (frontend + num_layers FeedForwardLayerV1)
# ---------------------------------------------------------------------------
@functools.partial(jax.jit, static_argnames=("window", "stride", "out_dtype"))
def feed_forward_encoder_v1(x, seq_mask, prepared, *, window, stride,
                            out_dtype=jnp.bfloat16):
    B = x.shape[0]
    x2d, mask_out, T_out = _frontend_unfold(x, seq_mask, window=window, stride=stride)
    # TODO(synk): dropout omitted (identity at inference / eval mode).
    y = fused_mlp(x2d, prepared["weights"], prepared["biases"], out_dtype=out_dtype)
    return y.reshape(B, T_out, -1), mask_out


# ---------------------------------------------------------------------------
# Pure-JAX f32 reference (golden check for the weight-flatten order etc.)
# ---------------------------------------------------------------------------
def _reference_forward(x, seq_mask, params, *, window, stride):
    B, T, F = x.shape
    T_out = (T - window) // stride + 1
    stop = (T_out - 1) * stride + 1
    taps = [x[:, tap: tap + stop: stride, :] for tap in range(window)]
    h = jnp.concatenate(taps, axis=-1).reshape(B * T_out, window * F)
    conv_w = params["conv_w"]
    w0 = jnp.transpose(conv_w, (2, 1, 0)).reshape(window * F, -1)
    h = jnp.maximum(h @ w0 + params["conv_b"], 0.0)
    for w, b in params["layers"]:
        h = jnp.maximum(h @ w + b, 0.0)
    mask_taps = [seq_mask[:, tap: tap + stop: stride] for tap in range(window)]
    mask_out = jnp.stack(mask_taps, axis=-1).any(axis=-1)
    return h.reshape(B, T_out, -1), mask_out


if __name__ == "__main__":
    # Small, deterministic config.  T=14 deliberately makes B*T_out=14 (not a tile
    # multiple) to exercise the padding path; stride==window => subsampling frontend.
    B, T, F_IN = 2, 14, 64
    WINDOW, STRIDE = 2, 2
    MODEL_DIM = 256                 # frontend out_features == layer input_dim
    HIDDEN_DIM = 256                # FeedForwardLayerV1 hidden_dim
    NUM_LAYERS = 2

    key = jax.random.PRNGKey(0)
    k_x, k_cw, k_cb, *k_layers = jax.random.split(key, 3 + 2 * NUM_LAYERS)

    data_tensor = jax.random.normal(k_x, (B, T, F_IN), dtype=jnp.float32)
    # last two frames of batch element 1 are padding
    sequence_mask = jnp.ones((B, T), dtype=bool).at[1, -2:].set(False)

    params = {
        "conv_w": 0.05 * jax.random.normal(k_cw, (MODEL_DIM, F_IN, WINDOW), jnp.float32),
        "conv_b": 0.01 * jax.random.normal(k_cb, (MODEL_DIM,), jnp.float32),
        "layers": [],
    }
    in_dim = MODEL_DIM
    for i in range(NUM_LAYERS):
        w = 0.05 * jax.random.normal(k_layers[2 * i], (in_dim, HIDDEN_DIM), jnp.float32)
        b = 0.01 * jax.random.normal(k_layers[2 * i + 1], (HIDDEN_DIM,), jnp.float32)
        params["layers"].append((w, b))
        in_dim = HIDDEN_DIM

    prepared = prepare_params(params)            # once, outside the jitted forward

    out, out_mask = feed_forward_encoder_v1(
        data_tensor, sequence_mask, prepared, window=WINDOW, stride=STRIDE
    )
    out = jax.block_until_ready(out)
    out_mask = jax.block_until_ready(out_mask)

    T_OUT = (T - WINDOW) // STRIDE + 1
    assert out.shape == (B, T_OUT, HIDDEN_DIM), out.shape
    assert out_mask.shape == (B, T_OUT), out_mask.shape
    assert bool(jnp.all(jnp.isfinite(out.astype(jnp.float32))))

    # Golden-value check vs. pure-JAX f32 reference (loose tol: bf16 compute path).
    ref_out, ref_mask = _reference_forward(
        data_tensor, sequence_mask, params, window=WINDOW, stride=STRIDE
    )
    assert bool(jnp.array_equal(out_mask, ref_mask))
    max_err = float(jnp.max(jnp.abs(out.astype(jnp.float32) - ref_out)))
    assert max_err < 1e-1, max_err

    print("KERNEL_OK")
</pallas_src>

<mosaic_0001>
module attributes {stable_mosaic.version = 11 : i64} {
  func.func @_fused_mlp_kernel(%arg0: i32, %arg1: memref<8x128xf32, #tpu.memory_space<vmem>>, %arg2: memref<128x256xbf16, #tpu.memory_space<vmem>>, %arg3: memref<1x256xf32, #tpu.memory_space<vmem>>, %arg4: memref<256x256xbf16, #tpu.memory_space<vmem>>, %arg5: memref<1x256xf32, #tpu.memory_space<vmem>>, %arg6: memref<256x256xbf16, #tpu.memory_space<vmem>>, %arg7: memref<1x256xf32, #tpu.memory_space<vmem>>, %arg8: memref<8x256xbf16, #tpu.memory_space<vmem>>) attributes {dimension_semantics = [#tpu.dimension_semantics<parallel>], iteration_bounds = array<i64: 2>, scalar_prefetch = 0 : i64, scratch_operands = 0 : i64, tpu.core_type = #tpu.core_type<tc>, window_params = [{transform_indices = @transform_0, window_bounds = array<i64: 8, 128>}, {pipeline_mode = #tpu.pipeline_mode<synchronous>, transform_indices = @transform_1, window_bounds = array<i64: 128, 256>}, {pipeline_mode = #tpu.pipeline_mode<synchronous>, transform_indices = @transform_2, window_bounds = array<i64: 1, 256>}, {pipeline_mode = #tpu.pipeline_mode<synchronous>, transform_indices = @transform_3, window_bounds = array<i64: 256, 256>}, {pipeline_mode = #tpu.pipeline_mode<synchronous>, transform_indices = @transform_4, window_bounds = array<i64: 1, 256>}, {pipeline_mode = #tpu.pipeline_mode<synchronous>, transform_indices = @transform_5, window_bounds = array<i64: 256, 256>}, {pipeline_mode = #tpu.pipeline_mode<synchronous>, transform_indices = @transform_6, window_bounds = array<i64: 1, 256>}, {transform_indices = @transform_7, window_bounds = array<i64: 8, 256>}]} {
    %c0 = arith.constant 0 : index
    %c0_0 = arith.constant 0 : index
    %0 = vector.load %arg1[%c0, %c0_0] : memref<8x128xf32, #tpu.memory_space<vmem>>, vector<8x128xf32>
    %1 = arith.truncf %0 : vector<8x128xf32> to vector<8x128xbf16>
    %c0_1 = arith.constant 0 : index
    %c0_2 = arith.constant 0 : index
    %2 = vector.load %arg2[%c0_1, %c0_2] : memref<128x256xbf16, #tpu.memory_space<vmem>>, vector<128x256xbf16>
    %cst = arith.constant dense<0.000000e+00> : vector<8x256xf32>
    %3 = tpu.matmul %1, %2, %cst {dimension_numbers = #tpu.dot_dimension_numbers<[1], [0], [0], [1], [0, 0, 1, 1], [], []>} : vector<8x128xbf16>, vector<128x256xbf16>, vector<8x256xf32> -> vector<8x256xf32>
    %c0_3 = arith.constant 0 : index
    %c0_4 = arith.constant 0 : index
    %4 = vector.load %arg3[%c0_3, %c0_4] : memref<1x256xf32, #tpu.memory_space<vmem>>, vector<1x256xf32>
    %5 = vector.broadcast %4 : vector<1x256xf32> to vector<8x256xf32>
    %6 = arith.addf %3, %5 : vector<8x256xf32>
    %cst_5 = arith.constant 0.000000e+00 : f32
    %7 = vector.broadcast %cst_5 : f32 to vector<8x256xf32>
    %8 = arith.maximumf %6, %7 : vector<8x256xf32>
    %9 = arith.truncf %8 : vector<8x256xf32> to vector<8x256xbf16>
    %c0_6 = arith.constant 0 : index
    %c0_7 = arith.constant 0 : index
    %10 = vector.load %arg4[%c0_6, %c0_7] : memref<256x256xbf16, #tpu.memory_space<vmem>>, vector<256x256xbf16>
    %cst_8 = arith.constant dense<0.000000e+00> : vector<8x256xf32>
    %11 = tpu.matmul %9, %10, %cst_8 {dimension_numbers = #tpu.dot_dimension_numbers<[1], [0], [0], [1], [0, 0, 1, 1], [], []>} : vector<8x256xbf16>, vector<256x256xbf16>, vector<8x256xf32> -> vector<8x256xf32>
    %c0_9 = arith.constant 0 : index
    %c0_10 = arith.constant 0 : index
    %12 = vector.load %arg5[%c0_9, %c0_10] : memref<1x256xf32, #tpu.memory_space<vmem>>, vector<1x256xf32>
    %13 = vector.broadcast %12 : vector<1x256xf32> to vector<8x256xf32>
    %14 = arith.addf %11, %13 : vector<8x256xf32>
    %cst_11 = arith.constant 0.000000e+00 : f32
    %15 = vector.broadcast %cst_11 : f32 to vector<8x256xf32>
    %16 = arith.maximumf %14, %15 : vector<8x256xf32>
    %17 = arith.truncf %16 : vector<8x256xf32> to vector<8x256xbf16>
    %c0_12 = arith.constant 0 : index
    %c0_13 = arith.constant 0 : index
    %18 = vector.load %arg6[%c0_12, %c0_13] : memref<256x256xbf16, #tpu.memory_space<vmem>>, vector<256x256xbf16>
    %cst_14 = arith.constant dense<0.000000e+00> : vector<8x256xf32>
    %19 = tpu.matmul %17, %18, %cst_14 {dimension_numbers = #tpu.dot_dimension_numbers<[1], [0], [0], [1], [0, 0, 1, 1], [], []>} : vector<8x256xbf16>, vector<256x256xbf16>, vector<8x256xf32> -> vector<8x256xf32>
    %c0_15 = arith.constant 0 : index
    %c0_16 = arith.constant 0 : index
    %20 = vector.load %arg7[%c0_15, %c0_16] : memref<1x256xf32, #tpu.memory_space<vmem>>, vector<1x256xf32>
    %21 = vector.broadcast %20 : vector<1x256xf32> to vector<8x256xf32>
    %22 = arith.addf %19, %21 : vector<8x256xf32>
    %cst_17 = arith.constant 0.000000e+00 : f32
    %23 = vector.broadcast %cst_17 : f32 to vector<8x256xf32>
    %24 = arith.maximumf %22, %23 : vector<8x256xf32>
    %25 = arith.truncf %24 : vector<8x256xf32> to vector<8x256xbf16>
    %c0_18 = arith.constant 0 : index
    %c0_19 = arith.constant 0 : index
    %26 = vector.load %arg8[%c0_18, %c0_19] : memref<8x256xbf16, #tpu.memory_space<vmem>>, vector<8x256xbf16>
    tpu.vector_store %arg8[%c0_18, %c0_19], %25 {strides = array<i32>} : memref<8x256xbf16, #tpu.memory_space<vmem>>, vector<8x256xbf16>,
    return
  }
  func.func @transform_0(%arg0: i32) -> (i32, i32) {
    %c0_i32 = arith.constant 0 : i32
    %c0_i32_0 = arith.constant 0 : i32
    return %arg0, %c0_i32 : i32, i32
  }
  func.func @transform_1(%arg0: i32) -> (i32, i32) {
    %c0_i32 = arith.constant 0 : i32
    %c0_i32_0 = arith.constant 0 : i32
    %c0_i32_1 = arith.constant 0 : i32
    return %c0_i32, %c0_i32_0 : i32, i32
  }
  func.func @transform_2(%arg0: i32) -> (i32, i32) {
    %c0_i32 = arith.constant 0 : i32
    %c0_i32_0 = arith.constant 0 : i32
    %c0_i32_1 = arith.constant 0 : i32
    return %c0_i32, %c0_i32_0 : i32, i32
  }
  func.func @transform_3(%arg0: i32) -> (i32, i32) {
    %c0_i32 = arith.constant 0 : i32
    %c0_i32_0 = arith.constant 0 : i32
    %c0_i32_1 = arith.constant 0 : i32
    return %c0_i32, %c0_i32_0 : i32, i32
  }
  func.func @transform_4(%arg0: i32) -> (i32, i32) {
    %c0_i32 = arith.constant 0 : i32
    %c0_i32_0 = arith.constant 0 : i32
    %c0_i32_1 = arith.constant 0 : i32
    return %c0_i32, %c0_i32_0 : i32, i32
  }
  func.func @transform_5(%arg0: i32) -> (i32, i32) {
    %c0_i32 = arith.constant 0 : i32
    %c0_i32_0 = arith.constant 0 : i32
    %c0_i32_1 = arith.constant 0 : i32
    return %c0_i32, %c0_i32_0 : i32, i32
  }
  func.func @transform_6(%arg0: i32) -> (i32, i32) {
    %c0_i32 = arith.constant 0 : i32
    %c0_i32_0 = arith.constant 0 : i32
    %c0_i32_1 = arith.constant 0 : i32
    return %c0_i32, %c0_i32_0 : i32, i32
  }
  func.func @transform_7(%arg0: i32) -> (i32, i32) {
    %c0_i32 = arith.constant 0 : i32
    %c0_i32_0 = arith.constant 0 : i32
    return %arg0, %c0_i32 : i32, i32
  }
}

</mosaic_0001>

<llo_original>
// kernel: feed_forward_encoder_v1.1
$region0: #{feed_forward_encoder_v1.1}
  #allocation0 [shape = 'u32[]', space=smem, size = 0x4, offset = 0x4, fixed_abs, tag = 'smem constant byte address 0x4 - core index']
  #allocation1 [shape = 'u32[144,128]{1,0:T(1,128)}', space=vmem, size = 0x12000, scoped, tag = 'internal scratch']
  %s0 = inlined_call_operand.vmem [shape: f32[16,128], index: 0, kind: input, shape index: {}]
  %s1 = inlined_call_operand.vmem [shape: bf16[128,256], index: 1, kind: input, shape index: {}]
  %s2 = inlined_call_operand.vmem [shape: f32[1,256], index: 2, kind: input, shape index: {}]
  %s3 = inlined_call_operand.hbm [shape: bf16[256,256], index: 3, kind: input, shape index: {}]
  %s4 = inlined_call_operand.vmem [shape: f32[1,256], index: 4, kind: input, shape index: {}]
  %s5 = inlined_call_operand.hbm [shape: bf16[256,256], index: 5, kind: input, shape index: {}]
  %s6 = inlined_call_operand.vmem [shape: f32[1,256], index: 6, kind: input, shape index: {}]
  %s7 = inlined_call_operand.vmem [shape: bf16[16,256], index: 7, kind: output, shape index: {}]
  %s8 = sld [smem:[#allocation0]]
  $region69: #{feed_forward_encoder_v1.1} parent=0
    _
  %s10 = ssub.s32 1, %s8
  %s11 = scalar_select 0, %s10, %s8
  $region1: #{feed_forward_encoder_v1.1} parent=0
    #allocation2 [shape = 'u8[131072]{0}', space=vmem, size = 0x20000, scoped, tag = 'input window, operand 3, single buffered']
    #allocation3 [shape = 's32[2]{0}', space=sflag, size = 0x8, scoped, tag = 'scoped memory for feed_forward_encoder_v1.1']
    #allocation4 [shape = 'u8[131072]{0}', space=vmem, size = 0x20000, scoped, tag = 'input window, operand 5, single buffered']
    #allocation5 [shape = 's32[1]{0}', space=sflag, size = 0x4, scoped, tag = 'scoped memory for feed_forward_encoder_v1.1']
    %12 = vsyncpa [#allocation3], 0
    %13 = vsyncpa [#allocation5], 0
    loop: start=0, step=1, limit=4
    $region2: #{feed_forward_encoder_v1.1} parent=1 // loop_pre_header
      _
    $region3: #{feed_forward_encoder_v1.1} parent=1 // loop_header
      %s15 = sphi 0, %s19
      %p16 = scmp.ge.s32.totalorder %s15, 4
      %s25 = sphi 0, %s27
      %s28 = sphi 0, %s25
      %s29 = sphi 0, %s28
      %s45 = sphi 0, %s29
      %s49 = sphi 0, %s49
      %s51 = sphi 0, %s49
      %s52 = sphi 0, %s51
      %s66 = sphi 0, %s52
      %s70 = sphi 0, %s70
      %s72 = sphi 0, %s70
      %s73 = sphi 0, %s72
      %s87 = sphi 0, %s73
      %s91 = sphi 0, %s91
      %s93 = sphi 0, %s91
      %s94 = sphi 0, %s93
      %s108 = sphi 0, %s94
      %s112 = sphi 0, %s112
      %s114 = sphi 0, %s112
      %s115 = sphi 0, %s114
      %s129 = sphi 0, %s115
      %s133 = sphi 0, %s133
      %s135 = sphi 0, %s133
      %s136 = sphi 0, %s135
      %s150 = sphi 0, %s136
      %s154 = sphi 0, %s154
      %s156 = sphi 0, %s154
      %s157 = sphi 0, %s156
      %s171 = sphi 0, %s157
      %s177 = sphi 0, %s179
      %s180 = sphi 0, %s177
      %s181 = sphi 0, %s180
      %s197 = sphi 0, %s181
    $region4: #{feed_forward_encoder_v1.1} parent=1 // loop_header_branch
      %18 = sbr.rel (%p16) target = $region8
    $region5: #{feed_forward_encoder_v1.1} parent=1 // loop_body
      %s20 = ssub.s32 %s15, 1
      %s21 = ssub.s32 %s15, 2
      %s22 = sadd.s32 %s15, 1
      %s23 = ssub.s32 %s15, %s22
      %p24 = scmp.eq.s32.totalorder %s23, 0
      %s26 = sadd.s32 %s25, 1
      %s27 = scalar_select %p24, %s25, %s26
      %p30 = pneg %p24
      %p31 = scmp.eq.s32.totalorder %s15, 1
      %p32 = por %p30, %p31
      %p33 = scmp.ne.s32.totalorder %s25, %s28
      %p34 = scmp.eq.s32.totalorder %s15, 0
      %p35 = por %p33, %p34
      %p36 = scmp.ne.s32.totalorder %s25, %s28
      %p37 = scmp.eq.s32.totalorder %s20, 1
      %p38 = por %p36, %p37
      %p39 = scmp.ne.s32.totalorder %s28, %s29
      %p40 = scmp.eq.s32.totalorder %s20, 0
      %p41 = por %p39, %p40
      %p42 = scmp.ne.s32.totalorder %s28, %s29
      %p43 = scmp.eq.s32.totalorder %s21, 1
      %p44 = por %p42, %p43
      %p46 = scmp.ne.s32.totalorder %s29, %s45
      %p47 = scmp.eq.s32.totalorder %s21, 0
      %p48 = por %p46, %p47
      %s50 = sadd.s32 %s49, 1
      %p53 = scmp.eq.s32.totalorder %s15, 1
      %p54 = scmp.ne.s32.totalorder %s49, %s51
      %p55 = scmp.eq.s32.totalorder %s15, 0
      %p56 = por %p54, %p55
      %p57 = scmp.ne.s32.totalorder %s49, %s51
      %p58 = scmp.eq.s32.totalorder %s20, 1
      %p59 = por %p57, %p58
      %p60 = scmp.ne.s32.totalorder %s51, %s52
      %p61 = scmp.eq.s32.totalorder %s20, 0
      %p62 = por %p60, %p61
      %p63 = scmp.ne.s32.totalorder %s51, %s52
      %p64 = scmp.eq.s32.totalorder %s21, 1
      %p65 = por %p63, %p64
      %p67 = scmp.ne.s32.totalorder %s52, %s66
      %p68 = scmp.eq.s32.totalorder %s21, 0
      %p69 = por %p67, %p68
      %s71 = sadd.s32 %s70, 1
      %p74 = scmp.eq.s32.totalorder %s15, 1
      %p75 = scmp.ne.s32.totalorder %s70, %s72
      %p76 = scmp.eq.s32.totalorder %s15, 0
      %p77 = por %p75, %p76
      %p78 = scmp.ne.s32.totalorder %s70, %s72
      %p79 = scmp.eq.s32.totalorder %s20, 1
      %p80 = por %p78, %p79
      %p81 = scmp.ne.s32.totalorder %s72, %s73
      %p82 = scmp.eq.s32.totalorder %s20, 0
      %p83 = por %p81, %p82
      %p84 = scmp.ne.s32.totalorder %s72, %s73
      %p85 = scmp.eq.s32.totalorder %s21, 1
      %p86 = por %p84, %p85
      %p88 = scmp.ne.s32.totalorder %s73, %s87
      %p89 = scmp.eq.s32.totalorder %s21, 0
      %p90 = por %p88, %p89
      %s92 = sadd.s32 %s91, 1
      %p95 = scmp.eq.s32.totalorder %s15, 1
      %p96 = scmp.ne.s32.totalorder %s91, %s93
      %p97 = scmp.eq.s32.totalorder %s15, 0
      %p98 = por %p96, %p97
      %p99 = scmp.ne.s32.totalorder %s91, %s93
      %p100 = scmp.eq.s32.totalorder %s20, 1
      %p101 = por %p99, %p100
      %p102 = scmp.ne.s32.totalorder %s93, %s94
      %p103 = scmp.eq.s32.totalorder %s20, 0
      %p104 = por %p102, %p103
      %p105 = scmp.ne.s32.totalorder %s93, %s94
      %p106 = scmp.eq.s32.totalorder %s21, 1
      %p107 = por %p105, %p106
      %p109 = scmp.ne.s32.totalorder %s94, %s108
      %p110 = scmp.eq.s32.totalorder %s21, 0
      %p111 = por %p109, %p110
      %s113 = sadd.s32 %s112, 1
      %p116 = scmp.eq.s32.totalorder %s15, 1
      %p117 = scmp.ne.s32.totalorder %s112, %s114
      %p118 = scmp.eq.s32.totalorder %s15, 0
      %p119 = por %p117, %p118
      %p120 = scmp.ne.s32.totalorder %s112, %s114
      %p121 = scmp.eq.s32.totalorder %s20, 1
      %p122 = por %p120, %p121
      %p123 = scmp.ne.s32.totalorder %s114, %s115
      %p124 = scmp.eq.s32.totalorder %s20, 0
      %p125 = por %p123, %p124
      %p126 = scmp.ne.s32.totalorder %s114, %s115
      %p127 = scmp.eq.s32.totalorder %s21, 1
      %p128 = por %p126, %p127
      %p130 = scmp.ne.s32.totalorder %s115, %s129
      %p131 = scmp.eq.s32.totalorder %s21, 0
      %p132 = por %p130, %p131
      %s134 = sadd.s32 %s133, 1
      %p137 = scmp.eq.s32.totalorder %s15, 1
      %p138 = scmp.ne.s32.totalorder %s133, %s135
      %p139 = scmp.eq.s32.totalorder %s15, 0
      %p140 = por %p138, %p139
      %p141 = scmp.ne.s32.totalorder %s133, %s135
      %p142 = scmp.eq.s32.totalorder %s20, 1
      %p143 = por %p141, %p142
      %p144 = scmp.ne.s32.totalorder %s135, %s136
      %p145 = scmp.eq.s32.totalorder %s20, 0
      %p146 = por %p144, %p145
      %p147 = scmp.ne.s32.totalorder %s135, %s136
      %p148 = scmp.eq.s32.totalorder %s21, 1
      %p149 = por %p147, %p148
      %p151 = scmp.ne.s32.totalorder %s136, %s150
      %p152 = scmp.eq.s32.totalorder %s21, 0
      %p153 = por %p151, %p152
      %s155 = sadd.s32 %s154, 1
      %p158 = scmp.eq.s32.totalorder %s15, 1
      %p159 = scmp.ne.s32.totalorder %s154, %s156
      %p160 = scmp.eq.s32.totalorder %s15, 0
      %p161 = por %p159, %p160
      %p162 = scmp.ne.s32.totalorder %s154, %s156
      %p163 = scmp.eq.s32.totalorder %s20, 1
      %p164 = por %p162, %p163
      %p165 = scmp.ne.s32.totalorder %s156, %s157
      %p166 = scmp.eq.s32.totalorder %s20, 0
      %p167 = por %p165, %p166
      %p168 = scmp.ne.s32.totalorder %s156, %s157
      %p169 = scmp.eq.s32.totalorder %s21, 1
      %p170 = por %p168, %p169
      %p172 = scmp.ne.s32.totalorder %s157, %s171
      %p173 = scmp.eq.s32.totalorder %s21, 0
      %p174 = por %p172, %p173
      %s175 = ssub.s32 %s15, %s22
      %p176 = scmp.eq.s32.totalorder %s175, 0
      %s178 = sadd.s32 %s177, 1
      %s179 = scalar_select %p176, %s177, %s178
      %p182 = pneg %p176
      %p183 = scmp.eq.s32.totalorder %s15, 1
      %p184 = por %p182, %p183
      %p185 = scmp.ne.s32.totalorder %s177, %s180
      %p186 = scmp.eq.s32.totalorder %s15, 0
      %p187 = por %p185, %p186
      %p188 = scmp.ne.s32.totalorder %s177, %s180
      %p189 = scmp.eq.s32.totalorder %s20, 1
      %p190 = por %p188, %p189
      %p191 = scmp.ne.s32.totalorder %s180, %s181
      %p192 = scmp.eq.s32.totalorder %s20, 0
      %p193 = por %p191, %p192
      %p194 = scmp.ne.s32.totalorder %s180, %s181
      %p195 = scmp.eq.s32.totalorder %s21, 1
      %p196 = por %p194, %p195
      %p198 = scmp.ne.s32.totalorder %s181, %s197
      %p199 = scmp.eq.s32.totalorder %s21, 0
      %p200 = por %p198, %p199
      %p201 = scmp.le.s32.totalorder 1, %s15
      %p202 = scmp.lt.s32.totalorder %s15, 3
      %p203 = pnand %p201, %p202
      %p204 = pneg %p203
      // Predicated region
      $region9: #{feed_forward_encoder_v1.1} parent=5 // pred_check
        _
      $region10: #{feed_forward_encoder_v1.1} parent=5 // pred_check_branch
        %206 = sbr.rel (%p203) target = $region12
      $region11: #{feed_forward_encoder_v1.1} parent=5 // pred_region
        %s207 = ssub.s32 %s15, 1
        // Predicated region
        $region13: #{feed_forward_encoder_v1.1} parent=11 // pred_check
          %p208 = pneg %p62
        $region14: #{feed_forward_encoder_v1.1} parent=11 // pred_check_branch
          %210 = sbr.rel (%p208) target = $region16
        $region15: #{feed_forward_encoder_v1.1} parent=11 // pred_region
          _
        $region16: #{feed_forward_encoder_v1.1} parent=11 // pred_fallthru
          _
        // Predicated region
        $region17: #{feed_forward_encoder_v1.1} parent=11 // pred_check
          %p211 = pneg %p83
        $region18: #{feed_forward_encoder_v1.1} parent=11 // pred_check_branch
          %213 = sbr.rel (%p211) target = $region20
        $region19: #{feed_forward_encoder_v1.1} parent=11 // pred_region
          _
        $region20: #{feed_forward_encoder_v1.1} parent=11 // pred_fallthru
          _
        // Predicated region
        $region21: #{feed_forward_encoder_v1.1} parent=11 // pred_check
          %p214 = pneg %p104
        $region22: #{feed_forward_encoder_v1.1} parent=11 // pred_check_branch
          %216 = sbr.rel (%p214) target = $region24
        $region23: #{feed_forward_encoder_v1.1} parent=11 // pred_region
          %s218 = ssub.s32 4096, 4096
          %219 = vsyncadd [#allocation3], %s218
          %s220 = sshll.u32 [#allocation2], 4
          %s221 = int_to_ptr.vmem [resolvable:$true] %s220
          %226 = dma.hbm_to_vmem [thread:$0]  %s3, 4096, %s221, [#allocation3], 128, 128, 8
        $region24: #{feed_forward_encoder_v1.1} parent=11 // pred_fallthru
          _
        // Predicated region
        $region25: #{feed_forward_encoder_v1.1} parent=11 // pred_check
          %p227 = pneg %p125
        $region26: #{feed_forward_encoder_v1.1} parent=11 // pred_check_branch
          %229 = sbr.rel (%p227) target = $region28
        $region27: #{feed_forward_encoder_v1.1} parent=11 // pred_region
          _
        $region28: #{feed_forward_encoder_v1.1} parent=11 // pred_fallthru
          _
        // Predicated region
        $region29: #{feed_forward_encoder_v1.1} parent=11 // pred_check
          %p230 = pneg %p146
        $region30: #{feed_forward_encoder_v1.1} parent=11 // pred_check_branch
          %232 = sbr.rel (%p230) target = $region32
        $region31: #{feed_forward_encoder_v1.1} parent=11 // pred_region
          %s234 = ssub.s32 4096, 4096
          %235 = vsyncadd [#allocation5], %s234
          %s236 = sshll.u32 [#allocation4], 4
          %s237 = int_to_ptr.vmem [resolvable:$true] %s236
          %242 = dma.hbm_to_vmem [thread:$0]  %s5, 4096, %s237, [#allocation5], 128, 128, 8
        $region32: #{feed_forward_encoder_v1.1} parent=11 // pred_fallthru
          _
        // Predicated region
        $region33: #{feed_forward_encoder_v1.1} parent=11 // pred_check
          %p243 = pneg %p167
        $region34: #{feed_forward_encoder_v1.1} parent=11 // pred_check_branch
          %245 = sbr.rel (%p243) target = $region36
        $region35: #{feed_forward_encoder_v1.1} parent=11 // pred_region
          _
        $region36: #{feed_forward_encoder_v1.1} parent=11 // pred_fallthru
          _
      $region12: #{feed_forward_encoder_v1.1} parent=5 // pred_fallthru
        _
      %p246 = scmp.lt.s32.totalorder %s15, 2
      // Predicated region
      $region37: #{feed_forward_encoder_v1.1} parent=5 // pred_check
        %p247 = pneg %p246
      $region38: #{feed_forward_encoder_v1.1} parent=5 // pred_check_branch
        %249 = sbr.rel (%p247) target = $region40
      $region39: #{feed_forward_encoder_v1.1} parent=5 // pred_region
        // Predicated region
        $region41: #{feed_forward_encoder_v1.1} parent=39 // pred_check
          %p250 = pneg %p35
        $region42: #{feed_forward_encoder_v1.1} parent=39 // pred_check_branch
          %252 = sbr.rel (%p250) target = $region44
        $region43: #{feed_forward_encoder_v1.1} parent=39 // pred_region
          %p253 = scmp.lt.s32.totalorder %s15, 1
          %s254 = scalar_select %p253, %s15, 1
          %s255 = smul.addr %s254, 8
          %s256 = scalar_lea.vmem %s0, %s255
        $region44: #{feed_forward_encoder_v1.1} parent=39 // pred_fallthru
          _
      $region40: #{feed_forward_encoder_v1.1} parent=5 // pred_fallthru
        _
      %p257 = scmp.le.s32.totalorder 1, %s15
      %p258 = scmp.lt.s32.totalorder %s15, 3
      %p259 = pnand %p257, %p258
      %p260 = pneg %p259
      // Predicated region
      $region45: #{feed_forward_encoder_v1.1} parent=5 // pred_check
        _
      $region46: #{feed_forward_encoder_v1.1} parent=5 // pred_check_branch
        %262 = sbr.rel (%p259) target = $region48
      $region47: #{feed_forward_encoder_v1.1} parent=5 // pred_region
        %s263 = ssub.s32 %s15, 1
        // Predicated region
        $region49: #{feed_forward_encoder_v1.1} parent=47 // pred_check
          %p264 = pneg %p104
        $region50: #{feed_forward_encoder_v1.1} parent=47 // pred_check_branch
          %266 = sbr.rel (%p264) target = $region52
        $region51: #{feed_forward_encoder_v1.1} parent=47 // pred_region
          %267 = dma.done [#allocation3], 4096
        $region52: #{feed_forward_encoder_v1.1} parent=47 // pred_fallthru
          _
        // Predicated region
        $region53: #{feed_forward_encoder_v1.1} parent=47 // pred_check
          %p268 = pneg %p146
        $region54: #{feed_forward_encoder_v1.1} parent=47 // pred_check_branch
          %270 = sbr.rel (%p268) target = $region56
        $region55: #{feed_forward_encoder_v1.1} parent=47 // pred_region
          %271 = dma.done [#allocation5], 4096
        $region56: #{feed_forward_encoder_v1.1} parent=47 // pred_fallthru
          _
        %p272 = scmp.lt.s32.totalorder %s20, 1
        %s273 = scalar_select %p272, %s20, 1
        %s274 = smul.addr %s273, 8
        %s275 = scalar_lea.vmem %s0, %s274
        %p276 = pneg %p41
        %p277 = pneg %p38
        %p278 = pneg %p62
        %p279 = pneg %p59
        %p280 = pneg %p83
        %p281 = pneg %p80
        %p282 = pneg %p104
        %p283 = pneg %p101
        %p284 = pneg %p125
        %p285 = pneg %p122
        %p286 = pneg %p146
        %p287 = pneg %p143
        %p288 = pneg %p167
        %p289 = pneg %p164
        %p290 = pneg %p193
        %p291 = pneg %p190
        %p292 = scmp.lt.s32.totalorder %s20, 1
        %s293 = scalar_select %p292, %s20, 1
        %s294 = smul.addr %s293, 2
        %s295 = smul.addr %s294, 4
        %s296 = scalar_lea.vmem %s7, %s295
        %p297 = scmp.lt.s32.totalorder %s20, 1
        %s298 = scalar_select %p297, %s20, 1
        %s299 = smul.addr %s298, 8
        %s300 = scalar_lea.vmem %s0, %s299
        %p301 = scmp.lt.s32.totalorder %s20, 1
        %s302 = scalar_select %p301, %s20, 1
        %s303 = smul.addr %s302, 2
        %s304 = smul.addr %s303, 4
        %s305 = scalar_lea.vmem %s7, %s304
        %v307 = vld [vmem:[%s300] sm:$0xff]
        %v308 = vpack.c.bf16 %v307, %v307
        %v309 = vld [vmem:[%s1] sm:$0xff]
        %v310 = vld [vmem:[%s1 + $0x8] sm:$0xff]
        %v311 = vld [vmem:[%s1 + $0x10] sm:$0xff]
        %v312 = vld [vmem:[%s1 + $0x18] sm:$0xff]
        %v313 = vld [vmem:[%s1 + $0x20] sm:$0xff]
        %v314 = vld [vmem:[%s1 + $0x28] sm:$0xff]
        %v315 = vld [vmem:[%s1 + $0x30] sm:$0xff]
        %v316 = vld [vmem:[%s1 + $0x38] sm:$0xff]
        %v317 = vld [vmem:[%s1 + $0x40] sm:$0xff]
        %v318 = vld [vmem:[%s1 + $0x48] sm:$0xff]
        %v319 = vld [vmem:[%s1 + $0x50] sm:$0xff]
        %v320 = vld [vmem:[%s1 + $0x58] sm:$0xff]
        %v321 = vld [vmem:[%s1 + $0x60] sm:$0xff]
        %v322 = vld [vmem:[%s1 + $0x68] sm:$0xff]
        %v323 = vld [vmem:[%s1 + $0x70] sm:$0xff]
        %v324 = vld [vmem:[%s1 + $0x78] sm:$0xff]
        %v325 = vld [vmem:[%s2] sm:$0x3]
        %v327 = vlaneseq
        %v328 = vshrl.u32 %v327, 7
        %v329 = vsub.s32 0, %v328
        %v330 = vrot.slane %v325, %v329
        %v331 = vlaneseq
        %v332 = vshrl.u32 %v331, 7
        %v333 = vsub.s32 1, %v332
        %v334 = vrot.slane %v325, %v333
        %v353 = vunpack.c.l.b16 %v309
        %v354 = vunpack.c.h.b16 %v309
        %v355 = vunpack.c.l.b16 %v310
        %v356 = vunpack.c.h.b16 %v310
        %v357 = vunpack.c.l.b16 %v311
        %v358 = vunpack.c.h.b16 %v311
        %v359 = vunpack.c.l.b16 %v312
        %v360 = vunpack.c.h.b16 %v312
        %v361 = vunpack.c.l.b16 %v313
        %v362 = vunpack.c.h.b16 %v313
        %v363 = vunpack.c.l.b16 %v314
        %v364 = vunpack.c.h.b16 %v314
        %v365 = vunpack.c.l.b16 %v315
        %v366 = vunpack.c.h.b16 %v315
        %v367 = vunpack.c.l.b16 %v316
        %v368 = vunpack.c.h.b16 %v316
        %v369 = vunpack.c.l.b16 %v317
        %v370 = vunpack.c.h.b16 %v317
        %v371 = vunpack.c.l.b16 %v318
        %v372 = vunpack.c.h.b16 %v318
        %v373 = vunpack.c.l.b16 %v319
        %v374 = vunpack.c.h.b16 %v319
        %v375 = vunpack.c.l.b16 %v320
        %v376 = vunpack.c.h.b16 %v320
        %v377 = vunpack.c.l.b16 %v321
        %v378 = vunpack.c.h.b16 %v321
        %v379 = vunpack.c.l.b16 %v322
        %v380 = vunpack.c.h.b16 %v322
        %v381 = vunpack.c.l.b16 %v323
        %v382 = vunpack.c.h.b16 %v323
        %v383 = vunpack.c.l.b16 %v324
        %v384 = vunpack.c.h.b16 %v324
        %v385 = vpack.c.b16 %v355, %v353
        %v386 = vpack.c.b16 %v356, %v354
        %v387 = vpack.c.b16 %v359, %v357
        %v388 = vpack.c.b16 %v360, %v358
        %v389 = vpack.c.b16 %v363, %v361
        %v390 = vpack.c.b16 %v364, %v362
        %v391 = vpack.c.b16 %v367, %v365
        %v392 = vpack.c.b16 %v368, %v366
        %v393 = vpack.c.b16 %v371, %v369
        %v394 = vpack.c.b16 %v372, %v370
        %v395 = vpack.c.b16 %v375, %v373
        %v396 = vpack.c.b16 %v376, %v374
        %v397 = vpack.c.b16 %v379, %v377
        %v398 = vpack.c.b16 %v380, %v378
        %v399 = vpack.c.b16 %v383, %v381
        %v400 = vpack.c.b16 %v384, %v382
        %417 = vmatprep.subr.bf16.mxu0 %v386
        %418 = vmatpush1.bf16.msra.mxu0 %v385
        %419 = vmatprep.subr.bf16.mxu0 %v388
        %420 = vmatpush1.bf16.msra.mxu0 %v387
        %421 = vmatprep.subr.bf16.mxu0 %v390
        %422 = vmatpush1.bf16.msra.mxu0 %v389
        %423 = vmatprep.subr.bf16.mxu0 %v392
        %424 = vmatpush1.bf16.msra.mxu0 %v391
        %425 = vmatprep.subr.bf16.mxu0 %v394
        %426 = vmatpush1.bf16.msra.mxu0 %v393
        %427 = vmatprep.subr.bf16.mxu0 %v396
        %428 = vmatpush1.bf16.msra.mxu0 %v395
        %429 = vmatprep.subr.bf16.mxu0 %v398
        %430 = vmatpush1.bf16.msra.mxu0 %v397
        %431 = vmatprep.subr.bf16.mxu0 %v400
        %432 = vmatpush1.bf16.msra.mxu0 %v399
        %433 = vmatprep.subr.bf16.mxu0 0
        %434 = vmatpush1.bf16.msra.mxu0 0
        %435 = vmatprep.subr.bf16.mxu0 0
        %436 = vmatpush1.bf16.msra.mxu0 0
        %437 = vmatprep.subr.bf16.mxu0 0
        %438 = vmatpush1.bf16.msra.mxu0 0
        %439 = vmatprep.subr.bf16.mxu0 0
        %440 = vmatpush1.bf16.msra.mxu0 0
        %441 = vmatprep.subr.bf16.mxu0 0
        %442 = vmatpush1.bf16.msra.mxu0 0
        %443 = vmatprep.subr.bf16.mxu0 0
        %444 = vmatpush1.bf16.msra.mxu0 0
        %445 = vmatprep.subr.bf16.mxu0 0
        %446 = vmatpush1.bf16.msra.mxu0 0
        %447 = vmatprep.subr.bf16.mxu0 0
        %448 = vmatpush1.bf16.msra.mxu0 0
        %449 = vmatprep.mubr.bf16.mxu0 0
        %450 = vmatmul.mubr.bf16.gmra.mrb[0].mxu0 %v308
        %v451 = vpop.f32.mrb[0].mxu0
        %v452 = vadd.f32 %v330, %v451
        %v453 = vpop.f32.mrb[0].mxu0
        %v454 = vadd.f32 %v334, %v453
        %v455 = vpop.f32.mrb[0].mxu0
        %v456 = vpop.f32.mrb[0].mxu0
        %457 = vdwg.mxu0
        %v458 = vmax.f32 %v452, 0.0
        %v459 = vmax.f32 %v454, 0.0
        %v460 = vpack.c.bf16 %v458, %v458
        %v461 = vpack.c.bf16 %v459, %v459
        %v462 = vld [vmem:[#allocation2] sm:$0xff]
        %v463 = vld [vmem:[#allocation2 + $0x8] sm:$0xff]
        %v464 = vld [vmem:[#allocation2 + $0x10] sm:$0xff]
        %v465 = vld [vmem:[#allocation2 + $0x18] sm:$0xff]
        %v466 = vld [vmem:[#allocation2 + $0x20] sm:$0xff]
        %v467 = vld [vmem:[#allocation2 + $0x28] sm:$0xff]
        %v468 = vld [vmem:[#allocation2 + $0x30] sm:$0xff]
        %v469 = vld [vmem:[#allocation2 + $0x38] sm:$0xff]
        %v470 = vld [vmem:[#allocation2 + $0x40] sm:$0xff]
        %v471 = vld [vmem:[#allocation2 + $0x48] sm:$0xff]
        %v472 = vld [vmem:[#allocation2 + $0x50] sm:$0xff]
        %v473 = vld [vmem:[#allocation2 + $0x58] sm:$0xff]
        %v474 = vld [vmem:[#allocation2 + $0x60] sm:$0xff]
        %v475 = vld [vmem:[#allocation2 + $0x68] sm:$0xff]
        %v476 = vld [vmem:[#allocation2 + $0x70] sm:$0xff]
        %v477 = vld [vmem:[#allocation2 + $0x78] sm:$0xff]
        %v478 = vld [vmem:[#allocation2 + $0x80] sm:$0xff]
        %v479 = vld [vmem:[#allocation2 + $0x88] sm:$0xff]
        %v480 = vld [vmem:[#allocation2 + $0x90] sm:$0xff]
        %v481 = vld [vmem:[#allocation2 + $0x98] sm:$0xff]
        %v482 = vld [vmem:[#allocation2 + $0xa0] sm:$0xff]
        %v483 = vld [vmem:[#allocation2 + $0xa8] sm:$0xff]
        %v484 = vld [vmem:[#allocation2 + $0xb0] sm:$0xff]
        %v485 = vld [vmem:[#allocation2 + $0xb8] sm:$0xff]
        %v486 = vld [vmem:[#allocation2 + $0xc0] sm:$0xff]
        %v487 = vld [vmem:[#allocation2 + $0xc8] sm:$0xff]
        %v488 = vld [vmem:[#allocation2 + $0xd0] sm:$0xff]
        %v489 = vld [vmem:[#allocation2 + $0xd8] sm:$0xff]
        %v490 = vld [vmem:[#allocation2 + $0xe0] sm:$0xff]
        %v491 = vld [vmem:[#allocation2 + $0xe8] sm:$0xff]
        %v492 = vld [vmem:[#allocation2 + $0xf0] sm:$0xff]
        %v493 = vld [vmem:[#allocation2 + $0xf8] sm:$0xff]
        %v494 = vld [vmem:[%s4] sm:$0x3]
        %v496 = vlaneseq
        %v497 = vshrl.u32 %v496, 7
        %v498 = vsub.s32 0, %v497
        %v499 = vrot.slane %v494, %v498
        %v500 = vlaneseq
        %v501 = vshrl.u32 %v500, 7
        %v502 = vsub.s32 1, %v501
        %v503 = vrot.slane %v494, %v502
        %v538 = vunpack.c.l.b16 %v462
        %v539 = vunpack.c.h.b16 %v462
        %v540 = vunpack.c.l.b16 %v463
        %v541 = vunpack.c.h.b16 %v463
        %v542 = vunpack.c.l.b16 %v464
        %v543 = vunpack.c.h.b16 %v464
        %v544 = vunpack.c.l.b16 %v465
        %v545 = vunpack.c.h.b16 %v465
        %v546 = vunpack.c.l.b16 %v466
        %v547 = vunpack.c.h.b16 %v466
        %v548 = vunpack.c.l.b16 %v467
        %v549 = vunpack.c.h.b16 %v467
        %v550 = vunpack.c.l.b16 %v468
        %v551 = vunpack.c.h.b16 %v468
        %v552 = vunpack.c.l.b16 %v469
        %v553 = vunpack.c.h.b16 %v469
        %v554 = vunpack.c.l.b16 %v470
        %v555 = vunpack.c.h.b16 %v470
        %v556 = vunpack.c.l.b16 %v471
        %v557 = vunpack.c.h.b16 %v471
        %v558 = vunpack.c.l.b16 %v472
        %v559 = vunpack.c.h.b16 %v472
        %v560 = vunpack.c.l.b16 %v473
        %v561 = vunpack.c.h.b16 %v473
        %v562 = vunpack.c.l.b16 %v474
        %v563 = vunpack.c.h.b16 %v474
        %v564 = vunpack.c.l.b16 %v475
        %v565 = vunpack.c.h.b16 %v475
        %v566 = vunpack.c.l.b16 %v476
        %v567 = vunpack.c.h.b16 %v476
        %v568 = vunpack.c.l.b16 %v477
        %v569 = vunpack.c.h.b16 %v477
        %v570 = vunpack.c.l.b16 %v478
        %v571 = vunpack.c.h.b16 %v478
        %v572 = vunpack.c.l.b16 %v479
        %v573 = vunpack.c.h.b16 %v479
        %v574 = vunpack.c.l.b16 %v480
        %v575 = vunpack.c.h.b16 %v480
        %v576 = vunpack.c.l.b16 %v481
        %v577 = vunpack.c.h.b16 %v481
        %v578 = vunpack.c.l.b16 %v482
        %v579 = vunpack.c.h.b16 %v482
        %v580 = vunpack.c.l.b16 %v483
        %v581 = vunpack.c.h.b16 %v483
        %v582 = vunpack.c.l.b16 %v484
        %v583 = vunpack.c.h.b16 %v484
        %v584 = vunpack.c.l.b16 %v485
        %v585 = vunpack.c.h.b16 %v485
        %v586 = vunpack.c.l.b16 %v486
        %v587 = vunpack.c.h.b16 %v486
        %v588 = vunpack.c.l.b16 %v487
        %v589 = vunpack.c.h.b16 %v487
        %v590 = vunpack.c.l.b16 %v488
        %v591 = vunpack.c.h.b16 %v488
        %v592 = vunpack.c.l.b16 %v489
        %v593 = vunpack.c.h.b16 %v489
        %v594 = vunpack.c.l.b16 %v490
        %v595 = vunpack.c.h.b16 %v490
        %v596 = vunpack.c.l.b16 %v491
        %v597 = vunpack.c.h.b16 %v491
        %v598 = vunpack.c.l.b16 %v492
        %v599 = vunpack.c.h.b16 %v492
        %v600 = vunpack.c.l.b16 %v493
        %v601 = vunpack.c.h.b16 %v493
        %v602 = vpack.c.b16 %v540, %v538
        %v603 = vpack.c.b16 %v541, %v539
        %v604 = vpack.c.b16 %v544, %v542
        %v605 = vpack.c.b16 %v545, %v543
        %v606 = vpack.c.b16 %v548, %v546
        %v607 = vpack.c.b16 %v549, %v547
        %v608 = vpack.c.b16 %v552, %v550
        %v609 = vpack.c.b16 %v553, %v551
        %v610 = vpack.c.b16 %v556, %v554
        %v611 = vpack.c.b16 %v557, %v555
        %v612 = vpack.c.b16 %v560, %v558
        %v613 = vpack.c.b16 %v561, %v559
        %v614 = vpack.c.b16 %v564, %v562
        %v615 = vpack.c.b16 %v565, %v563
        %v616 = vpack.c.b16 %v568, %v566
        %v617 = vpack.c.b16 %v569, %v567
        %v618 = vpack.c.b16 %v572, %v570
        %v619 = vpack.c.b16 %v573, %v571
        %v620 = vpack.c.b16 %v576, %v574
        %v621 = vpack.c.b16 %v577, %v575
        %v622 = vpack.c.b16 %v580, %v578
        %v623 = vpack.c.b16 %v581, %v579
        %v624 = vpack.c.b16 %v584, %v582
        %v625 = vpack.c.b16 %v585, %v583
        %v626 = vpack.c.b16 %v588, %v586
        %v627 = vpack.c.b16 %v589, %v587
        %v628 = vpack.c.b16 %v592, %v590
        %v629 = vpack.c.b16 %v593, %v591
        %v630 = vpack.c.b16 %v596, %v594
        %v631 = vpack.c.b16 %v597, %v595
        %v632 = vpack.c.b16 %v600, %v598
        %v633 = vpack.c.b16 %v601, %v599
        %666 = vmatprep.subr.bf16.mxu0 %v603
        %667 = vmatpush1.bf16.msra.mxu0 %v602
        %668 = vmatprep.subr.bf16.mxu0 %v605
        %669 = vmatpush1.bf16.msra.mxu0 %v604
        %670 = vmatprep.subr.bf16.mxu0 %v607
        %671 = vmatpush1.bf16.msra.mxu0 %v606
        %672 = vmatprep.subr.bf16.mxu0 %v609
        %673 = vmatpush1.bf16.msra.mxu0 %v608
        %674 = vmatprep.subr.bf16.mxu0 %v611
        %675 = vmatpush1.bf16.msra.mxu0 %v610
        %676 = vmatprep.subr.bf16.mxu0 %v613
        %677 = vmatpush1.bf16.msra.mxu0 %v612
        %678 = vmatprep.subr.bf16.mxu0 %v615
        %679 = vmatpush1.bf16.msra.mxu0 %v614
        %680 = vmatprep.subr.bf16.mxu0 %v617
        %681 = vmatpush1.bf16.msra.mxu0 %v616
        %682 = vmatprep.subr.bf16.mxu0 %v619
        %683 = vmatpush1.bf16.msra.mxu0 %v618
        %684 = vmatprep.subr.bf16.mxu0 %v621
        %685 = vmatpush1.bf16.msra.mxu0 %v620
        %686 = vmatprep.subr.bf16.mxu0 %v623
        %687 = vmatpush1.bf16.msra.mxu0 %v622
        %688 = vmatprep.subr.bf16.mxu0 %v625
        %689 = vmatpush1.bf16.msra.mxu0 %v624
        %690 = vmatprep.subr.bf16.mxu0 %v627
        %691 = vmatpush1.bf16.msra.mxu0 %v626
        %692 = vmatprep.subr.bf16.mxu0 %v629
        %693 = vmatpush1.bf16.msra.mxu0 %v628
        %694 = vmatprep.subr.bf16.mxu0 %v631
        %695 = vmatpush1.bf16.msra.mxu0 %v630
        %696 = vmatprep.subr.bf16.mxu0 %v633
        %697 = vmatpush1.bf16.msra.mxu0 %v632
        %698 = vmatprep.mubr.bf16.mxu0 %v461
        %699 = vmatmul.mubr.bf16.gmra.mrb[0].mxu0 %v460
        %v700 = vpop.f32.mrb[0].mxu0
        %v701 = vadd.f32 %v499, %v700
        %v702 = vpop.f32.mrb[0].mxu0
        %v703 = vadd.f32 %v503, %v702
        %v704 = vpop.f32.mrb[0].mxu0
        %v705 = vpop.f32.mrb[0].mxu0
        %706 = vdwg.mxu0
        %v707 = vmax.f32 %v701, 0.0
        %v708 = vmax.f32 %v703, 0.0
        %v709 = vpack.c.bf16 %v707, %v707
        %v710 = vpack.c.bf16 %v708, %v708
        %v711 = vld [vmem:[#allocation4] sm:$0xff]
        %v712 = vld [vmem:[#allocation4 + $0x8] sm:$0xff]
        %v713 = vld [vmem:[#allocation4 + $0x10] sm:$0xff]
        %v714 = vld [vmem:[#allocation4 + $0x18] sm:$0xff]
        %v715 = vld [vmem:[#allocation4 + $0x20] sm:$0xff]
        %v716 = vld [vmem:[#allocation4 + $0x28] sm:$0xff]
        %v717 = vld [vmem:[#allocation4 + $0x30] sm:$0xff]
        %v718 = vld [vmem:[#allocation4 + $0x38] sm:$0xff]
        %v719 = vld [vmem:[#allocation4 + $0x40] sm:$0xff]
        %v720 = vld [vmem:[#allocation4 + $0x48] sm:$0xff]
        %v721 = vld [vmem:[#allocation4 + $0x50] sm:$0xff]
        %v722 = vld [vmem:[#allocation4 + $0x58] sm:$0xff]
        %v723 = vld [vmem:[#allocation4 + $0x60] sm:$0xff]
        %v724 = vld [vmem:[#allocation4 + $0x68] sm:$0xff]
        %v725 = vld [vmem:[#allocation4 + $0x70] sm:$0xff]
        %v726 = vld [vmem:[#allocation4 + $0x78] sm:$0xff]
        %v727 = vld [vmem:[#allocation4 + $0x80] sm:$0xff]
        %v728 = vld [vmem:[#allocation4 + $0x88] sm:$0xff]
        %v729 = vld [vmem:[#allocation4 + $0x90] sm:$0xff]
        %v730 = vld [vmem:[#allocation4 + $0x98] sm:$0xff]
        %v731 = vld [vmem:[#allocation4 + $0xa0] sm:$0xff]
        %v732 = vld [vmem:[#allocation4 + $0xa8] sm:$0xff]
        %v733 = vld [vmem:[#allocation4 + $0xb0] sm:$0xff]
        %v734 = vld [vmem:[#allocation4 + $0xb8] sm:$0xff]
        %v735 = vld [vmem:[#allocation4 + $0xc0] sm:$0xff]
        %v736 = vld [vmem:[#allocation4 + $0xc8] sm:$0xff]
        %v737 = vld [vmem:[#allocation4 + $0xd0] sm:$0xff]
        %v738 = vld [vmem:[#allocation4 + $0xd8] sm:$0xff]
        %v739 = vld [vmem:[#allocation4 + $0xe0] sm:$0xff]
        %v740 = vld [vmem:[#allocation4 + $0xe8] sm:$0xff]
        %v741 = vld [vmem:[#allocation4 + $0xf0] sm:$0xff]
        %v742 = vld [vmem:[#allocation4 + $0xf8] sm:$0xff]
        %v743 = vld [vmem:[%s6] sm:$0x3]
        %v745 = vlaneseq
        %v746 = vshrl.u32 %v745, 7
        %v747 = vsub.s32 0, %v746
        %v748 = vrot.slane %v743, %v747
        %v749 = vlaneseq
        %v750 = vshrl.u32 %v749, 7
        %v751 = vsub.s32 1, %v750
        %v752 = vrot.slane %v743, %v751
        %v787 = vunpack.c.l.b16 %v711
        %v788 = vunpack.c.h.b16 %v711
        %v789 = vunpack.c.l.b16 %v712
        %v790 = vunpack.c.h.b16 %v712
        %v791 = vunpack.c.l.b16 %v713
        %v792 = vunpack.c.h.b16 %v713
        %v793 = vunpack.c.l.b16 %v714
        %v794 = vunpack.c.h.b16 %v714
        %v795 = vunpack.c.l.b16 %v715
        %v796 = vunpack.c.h.b16 %v715
        %v797 = vunpack.c.l.b16 %v716
        %v798 = vunpack.c.h.b16 %v716
        %v799 = vunpack.c.l.b16 %v717
        %v800 = vunpack.c.h.b16 %v717
        %v801 = vunpack.c.l.b16 %v718
        %v802 = vunpack.c.h.b16 %v718
        %v803 = vunpack.c.l.b16 %v719
        %v804 = vunpack.c.h.b16 %v719
        %v805 = vunpack.c.l.b16 %v720
        %v806 = vunpack.c.h.b16 %v720
        %v807 = vunpack.c.l.b16 %v721
        %v808 = vunpack.c.h.b16 %v721
        %v809 = vunpack.c.l.b16 %v722
        %v810 = vunpack.c.h.b16 %v722
        %v811 = vunpack.c.l.b16 %v723
        %v812 = vunpack.c.h.b16 %v723
        %v813 = vunpack.c.l.b16 %v724
        %v814 = vunpack.c.h.b16 %v724
        %v815 = vunpack.c.l.b16 %v725
        %v816 = vunpack.c.h.b16 %v725
        %v817 = vunpack.c.l.b16 %v726
        %v818 = vunpack.c.h.b16 %v726
        %v819 = vunpack.c.l.b16 %v727
        %v820 = vunpack.c.h.b16 %v727
        %v821 = vunpack.c.l.b16 %v728
        %v822 = vunpack.c.h.b16 %v728
        %v823 = vunpack.c.l.b16 %v729
        %v824 = vunpack.c.h.b16 %v729
        %v825 = vunpack.c.l.b16 %v730
        %v826 = vunpack.c.h.b16 %v730
        %v827 = vunpack.c.l.b16 %v731
        %v828 = vunpack.c.h.b16 %v731
        %v829 = vunpack.c.l.b16 %v732
        %v830 = vunpack.c.h.b16 %v732
        %v831 = vunpack.c.l.b16 %v733
        %v832 = vunpack.c.h.b16 %v733
        %v833 = vunpack.c.l.b16 %v734
        %v834 = vunpack.c.h.b16 %v734
        %v835 = vunpack.c.l.b16 %v735
        %v836 = vunpack.c.h.b16 %v735
        %v837 = vunpack.c.l.b16 %v736
        %v838 = vunpack.c.h.b16 %v736
        %v839 = vunpack.c.l.b16 %v737
        %v840 = vunpack.c.h.b16 %v737
        %v841 = vunpack.c.l.b16 %v738
        %v842 = vunpack.c.h.b16 %v738
        %v843 = vunpack.c.l.b16 %v739
        %v844 = vunpack.c.h.b16 %v739
        %v845 = vunpack.c.l.b16 %v740
        %v846 = vunpack.c.h.b16 %v740
        %v847 = vunpack.c.l.b16 %v741
        %v848 = vunpack.c.h.b16 %v741
        %v849 = vunpack.c.l.b16 %v742
        %v850 = vunpack.c.h.b16 %v742
        %v851 = vpack.c.b16 %v789, %v787
        %v852 = vpack.c.b16 %v790, %v788
        %v853 = vpack.c.b16 %v793, %v791
        %v854 = vpack.c.b16 %v794, %v792
        %v855 = vpack.c.b16 %v797, %v795
        %v856 = vpack.c.b16 %v798, %v796
        %v857 = vpack.c.b16 %v801, %v799
        %v858 = vpack.c.b16 %v802, %v800
        %v859 = vpack.c.b16 %v805, %v803
        %v860 = vpack.c.b16 %v806, %v804
        %v861 = vpack.c.b16 %v809, %v807
        %v862 = vpack.c.b16 %v810, %v808
        %v863 = vpack.c.b16 %v813, %v811
        %v864 = vpack.c.b16 %v814, %v812
        %v865 = vpack.c.b16 %v817, %v815
        %v866 = vpack.c.b16 %v818, %v816
        %v867 = vpack.c.b16 %v821, %v819
        %v868 = vpack.c.b16 %v822, %v820
        %v869 = vpack.c.b16 %v825, %v823
        %v870 = vpack.c.b16 %v826, %v824
        %v871 = vpack.c.b16 %v829, %v827
        %v872 = vpack.c.b16 %v830, %v828
        %v873 = vpack.c.b16 %v833, %v831
        %v874 = vpack.c.b16 %v834, %v832
        %v875 = vpack.c.b16 %v837, %v835
        %v876 = vpack.c.b16 %v838, %v836
        %v877 = vpack.c.b16 %v841, %v839
        %v878 = vpack.c.b16 %v842, %v840
        %v879 = vpack.c.b16 %v845, %v843
        %v880 = vpack.c.b16 %v846, %v844
        %v881 = vpack.c.b16 %v849, %v847
        %v882 = vpack.c.b16 %v850, %v848
        %915 = vmatprep.subr.bf16.mxu0 %v852
        %916 = vmatpush1.bf16.msra.mxu0 %v851
        %917 = vmatprep.subr.bf16.mxu0 %v854
        %918 = vmatpush1.bf16.msra.mxu0 %v853
        %919 = vmatprep.subr.bf16.mxu0 %v856
        %920 = vmatpush1.bf16.msra.mxu0 %v855
        %921 = vmatprep.subr.bf16.mxu0 %v858
        %922 = vmatpush1.bf16.msra.mxu0 %v857
        %923 = vmatprep.subr.bf16.mxu0 %v860
        %924 = vmatpush1.bf16.msra.mxu0 %v859
        %925 = vmatprep.subr.bf16.mxu0 %v862
        %926 = vmatpush1.bf16.msra.mxu0 %v861
        %927 = vmatprep.subr.bf16.mxu0 %v864
        %928 = vmatpush1.bf16.msra.mxu0 %v863
        %929 = vmatprep.subr.bf16.mxu0 %v866
        %930 = vmatpush1.bf16.msra.mxu0 %v865
        %931 = vmatprep.subr.bf16.mxu0 %v868
        %932 = vmatpush1.bf16.msra.mxu0 %v867
        %933 = vmatprep.subr.bf16.mxu0 %v870
        %934 = vmatpush1.bf16.msra.mxu0 %v869
        %935 = vmatprep.subr.bf16.mxu0 %v872
        %936 = vmatpush1.bf16.msra.mxu0 %v871
        %937 = vmatprep.subr.bf16.mxu0 %v874
        %938 = vmatpush1.bf16.msra.mxu0 %v873
        %939 = vmatprep.subr.bf16.mxu0 %v876
        %940 = vmatpush1.bf16.msra.mxu0 %v875
        %941 = vmatprep.subr.bf16.mxu0 %v878
        %942 = vmatpush1.bf16.msra.mxu0 %v877
        %943 = vmatprep.subr.bf16.mxu0 %v880
        %944 = vmatpush1.bf16.msra.mxu0 %v879
        %945 = vmatprep.subr.bf16.mxu0 %v882
        %946 = vmatpush1.bf16.msra.mxu0 %v881
        %947 = vmatprep.mubr.bf16.mxu0 %v710
        %948 = vmatmul.mubr.bf16.gmra.mrb[0].mxu0 %v709
        %v949 = vpop.f32.mrb[0].mxu0
        %v950 = vadd.f32 %v748, %v949
        %v951 = vpop.f32.mrb[0].mxu0
        %v952 = vadd.f32 %v752, %v951
        %v953 = vpop.f32.mrb[0].mxu0
        %v954 = vpop.f32.mrb[0].mxu0
        %955 = vdwg.mxu0
        %v956 = vmax.f32 %v950, 0.0
        %v957 = vmax.f32 %v952, 0.0
        %v958 = vpack.c.bf16 %v956, %v956
        %v959 = vpack.c.bf16 %v957, %v957
        %v962 = vunpack.c.l.b16 %v958
        %v963 = vunpack.c.l.b16 %v959
        %v964 = vpack.c.b16 %v963, %v962
        %966 = vst [vmem:[%s305] sm:$0xff] %v964
        %p967 = scmp.lt.s32.totalorder %s20, 1
        %s968 = scalar_select %p967, %s20, 1
        %s969 = smul.addr %s968, 2
        %s970 = smul.addr %s969, 4
        %s971 = scalar_lea.vmem %s7, %s970
        // Predicated region
        $region57: #{feed_forward_encoder_v1.1} parent=47 // pred_check
          %p972 = pneg %p190
        $region58: #{feed_forward_encoder_v1.1} parent=47 // pred_check_branch
          %974 = sbr.rel (%p972) target = $region60
        $region59: #{feed_forward_encoder_v1.1} parent=47 // pred_region
          _
        $region60: #{feed_forward_encoder_v1.1} parent=47 // pred_fallthru
          _
      $region48: #{feed_forward_encoder_v1.1} parent=5 // pred_fallthru
        _
      %p975 = scmp.le.s32.totalorder 2, %s15
      // Predicated region
      $region61: #{feed_forward_encoder_v1.1} parent=5 // pred_check
        %p976 = pneg %p975
      $region62: #{feed_forward_encoder_v1.1} parent=5 // pred_check_branch
        %978 = sbr.rel (%p976) target = $region64
      $region63: #{feed_forward_encoder_v1.1} parent=5 // pred_region
        %s979 = ssub.s32 %s15, 2
        // Predicated region
        $region65: #{feed_forward_encoder_v1.1} parent=63 // pred_check
          %p980 = pneg %p196
        $region66: #{feed_forward_encoder_v1.1} parent=63 // pred_check_branch
          %982 = sbr.rel (%p980) target = $region68
        $region67: #{feed_forward_encoder_v1.1} parent=63 // pred_region
          %p983 = scmp.lt.s32.totalorder %s21, 1
          %s984 = scalar_select %p983, %s21, 1
          %s985 = smul.addr %s984, 2
          %s986 = smul.addr %s985, 4
          %s987 = scalar_lea.vmem %s7, %s986
        $region68: #{feed_forward_encoder_v1.1} parent=63 // pred_fallthru
          _
      $region64: #{feed_forward_encoder_v1.1} parent=5 // pred_fallthru
        _
    $region6: #{feed_forward_encoder_v1.1} parent=1 // loop_footer
      %s19 = sadd.s32 1, %s15
    $region7: #{feed_forward_encoder_v1.1} parent=1 // loop_footer_branch
      %14 = sbr.rel target = $region3
    $region8: #{feed_forward_encoder_v1.1} parent=1 // loop_exit
      _
    %988 = vsyncpa [#allocation3], 1
    %s989 = scalar_lea.sflag [#allocation3], 1
    %990 = vsyncpa %s989, 1
    %991 = vsyncpa [#allocation5], 1

</llo_original>
